<compile_context>
chip_gen: v6e
topology: v6e:2x2x1
jax: 0.10.0
libtpu: 0.0.40
codegen_flags: <defaults>
</compile_context>

<pallas_src>
import jax
import jax.numpy as jnp
from jax import lax
from jax.experimental import pallas as pl
from jax.experimental.pallas import tpu as pltpu


HIGHWAY_ORDER = ('wl0', 'bl0', 'wg0', 'bg0', 'wl1', 'bl1', 'wg1', 'bg1')


def _row_tile(n, target=512):
    """Row tile for N-tiled kernels: full array when small, 8-aligned otherwise."""
    if n <= target:
        return n
    return target - (target % 8)


def _batch_tile(b, target=64):
    """Batch tile for the LSTM kernel (must be a multiple of 8 or the full B)."""
    if b % 8 != 0:
        return b
    return min(b, target)


# ---------------------------------------------------------------------------
# fused char CNN (Conv2d(char_dim, width)) + max-pool + 2-layer highway
# ---------------------------------------------------------------------------
def _embed_highway_kernel(win_ref, wconv_ref, bconv_ref, wemb_ref,
                          wl0, bl0, wg0, bg0, wl1, bl1, wg1, bg1, o_ref):
    # win_ref: (T_out, Nt, D*KW) im2col windows; wconv: (D*KW, C); bconv: (1, C)
    # wemb_ref: (Nt, word_dim); highway weights (d2, d2)/(1, d2); o_ref: (Nt, d2)
    t_out = win_ref.shape[0]
    wconv = wconv_ref[...]
    bconv = bconv_ref[...]

    # conv + max_pool1d over all conv positions, batched over the row tile
    feat = jnp.dot(win_ref[0], wconv, preferred_element_type=jnp.float32) + bconv
    for t in range(1, t_out):
        v = jnp.dot(win_ref[t], wconv, preferred_element_type=jnp.float32) + bconv
        feat = jnp.maximum(feat, v)

    # concat with word embedding, then the 2-layer highway network
    x = jnp.concatenate([feat, wemb_ref[...]], axis=-1)
    for wl, bl, wg, bg in ((wl0, bl0, wg0, bg0), (wl1, bl1, wg1, bg1)):
        h = jax.nn.relu(jnp.dot(x, wl[...], preferred_element_type=jnp.float32) + bl[...])
        g = jax.nn.sigmoid(jnp.dot(x, wg[...], preferred_element_type=jnp.float32) + bg[...])
        x = g * h + (1.0 - g) * x
    o_ref[...] = x


def embed_highway(char_ids, word_ids, params):
    # char_ids: (B, L, W) int32 ; word_ids: (B, L) int32 -> (B, L, d2)
    B, L, W = char_ids.shape
    D = params['char_emb'].shape[1]
    KW = params['char_conv_w'].shape[1]
    C = params['char_conv_w'].shape[2]
    word_dim = params['word_emb'].shape[1]
    d2 = C + word_dim
    N = B * L
    T_out = W - KW + 1

    e = jnp.take(params['char_emb'], char_ids, axis=0)          # (B, L, W, D)
    # faithful to the PyTorch reference: raw .view (reshape), NOT a transpose
    x_ndw = e.reshape(N, D, W)                                  # (N, D, W)
    windows = jnp.stack(
        [x_ndw[:, :, t:t + KW].reshape(N, D * KW) for t in range(T_out)], axis=0)
    w_flat = params['char_conv_w'].reshape(D * KW, C)
    wemb = jnp.take(params['word_emb'], word_ids, axis=0).reshape(N, word_dim)

    hp = params['highway']
    nt = _row_tile(N)
    out = pl.pallas_call(
        _embed_highway_kernel,
        out_shape=jax.ShapeDtypeStruct((N, d2), jnp.float32),
        grid=(pl.cdiv(N, nt),),
        in_specs=[
            pl.BlockSpec((T_out, nt, D * KW), lambda i: (0, i, 0)),
            pl.BlockSpec((D * KW, C), lambda i: (0, 0)),
            pl.BlockSpec((1, C), lambda i: (0, 0)),
            pl.BlockSpec((nt, word_dim), lambda i: (i, 0)),
        ] + [pl.BlockSpec(hp[k].shape, lambda i: (0, 0)) for k in HIGHWAY_ORDER],
        out_specs=pl.BlockSpec((nt, d2), lambda i: (i, 0)),
        compiler_params=pltpu.CompilerParams(
            dimension_semantics=("parallel",),
            vmem_limit_bytes=48 * 1024 * 1024),
    )(windows, w_flat, params['char_conv_b'], wemb, *[hp[k] for k in HIGHWAY_ORDER])
    return out.reshape(B, L, d2)


# ---------------------------------------------------------------------------
# fused bidirectional LSTM (batched recurrence, both directions in one body)
# ---------------------------------------------------------------------------
def _bilstm_kernel(x_ref, wih_ref, whh_f_ref, whh_b_ref, b_ref, o_ref,
                   xproj, hseq_f, hseq_b):
    # x_ref: (T, Bt, Din) time-major input tile
    # wih_ref: (Din, 8H) = [fwd | bwd]; whh_*: (H, 4H); b_ref: (1, 8H)
    # o_ref: (T, Bt, 2H) -- fwd hidden in [..., :H], bwd hidden in [..., H:]
    T, Bt, _ = x_ref.shape
    H = whh_f_ref.shape[0]
    H4 = 4 * H

    wih = wih_ref[...]
    bias = b_ref[...]
    whh_f = whh_f_ref[...]
    whh_b = whh_b_ref[...]

    # Input projection for the whole tile (batched over Bt rows per step;
    # kept off the serial h-dependency chain of the recurrence).
    def proj_step(t, carry):
        v = jnp.dot(x_ref[t], wih, preferred_element_type=jnp.float32) + bias
        xproj[pl.ds(t, 1), :, :] = v[None]
        return carry

    lax.fori_loop(0, T, proj_step, 0)

    def lstm_cell(pre, h, c, whh):
        g = pre + jnp.dot(h, whh, preferred_element_type=jnp.float32)
        # PyTorch gate order: i, f, g, o
        # TODO(synk): pad H to a multiple of 128 at realistic sizes so the
        # gate slices are lane-aligned (no per-step relayout).
        i = jax.nn.sigmoid(g[:, 0:H])
        f = jax.nn.sigmoid(g[:, H:2 * H])
        gg = jnp.tanh(g[:, 2 * H:3 * H])
        o = jax.nn.sigmoid(g[:, 3 * H:4 * H])
        c = f * c + i * gg
        h = o * jnp.tanh(c)
        return h, c

    def step(t, carry):
        h_f, c_f, h_b, c_b = carry
        tb = T - 1 - t
        h_f, c_f = lstm_cell(xproj[t][:, :H4], h_f, c_f, whh_f)
        h_b, c_b = lstm_cell(xproj[tb][:, H4:], h_b, c_b, whh_b)
        hseq_f[pl.ds(t, 1), :, :] = h_f[None]
        hseq_b[pl.ds(tb, 1), :, :] = h_b[None]
        return h_f, c_f, h_b, c_b

    z = jnp.zeros((Bt, H), jnp.float32)
    lax.fori_loop(0, T, step, (z, z, z, z))

    o_ref[...] = jnp.concatenate([hseq_f[...], hseq_b[...]], axis=-1)


def bilstm(x, p):
    # x: (B, T, Din) -> (B, T, 2H)
    # TODO(synk): pack_padded_sequence-style length masking is not implemented;
    # sequences are treated as full length.
    B, T, Din = x.shape
    H = p['whh_f'].shape[0]
    wih = jnp.concatenate([p['wih_f'], p['wih_b']], axis=1)     # (Din, 8H)
    b = jnp.concatenate([p['b_f'], p['b_b']], axis=1)           # (1, 8H)
    x_t = jnp.transpose(x, (1, 0, 2))                           # time-major
    bt = _batch_tile(B)
    out = pl.pallas_call(
        _bilstm_kernel,
        out_shape=jax.ShapeDtypeStruct((T, B, 2 * H), jnp.float32),
        grid=(pl.cdiv(B, bt),),
        in_specs=[
            pl.BlockSpec((T, bt, Din), lambda i: (0, i, 0)),
            pl.BlockSpec((Din, 8 * H), lambda i: (0, 0)),
            pl.BlockSpec((H, 4 * H), lambda i: (0, 0)),
            pl.BlockSpec((H, 4 * H), lambda i: (0, 0)),
            pl.BlockSpec((1, 8 * H), lambda i: (0, 0)),
        ],
        out_specs=pl.BlockSpec((T, bt, 2 * H), lambda i: (0, i, 0)),
        scratch_shapes=[pltpu.VMEM((T, bt, 8 * H), jnp.float32),
                        pltpu.VMEM((T, bt, H), jnp.float32),
                        pltpu.VMEM((T, bt, H), jnp.float32)],
        compiler_params=pltpu.CompilerParams(
            dimension_semantics=("parallel",),
            vmem_limit_bytes=48 * 1024 * 1024),
    )(x_t, wih, p['whh_f'], p['whh_b'], b)
    return jnp.transpose(out, (1, 0, 2))


# ---------------------------------------------------------------------------
# attention-flow layer (similarity, both softmaxes, c2q / q2c, concat)
# ---------------------------------------------------------------------------
def _att_flow_kernel(c_ref, q_ref, qt_ref, wc_ref, wq_ref, wcq_ref, b_ref, g_ref):
    c = c_ref[0]                                                # (Lc, D)
    q = q_ref[0]                                                # (Lq, D)
    qt = qt_ref[0]                                              # (D, Lq) pre-transposed
    c_lin = jnp.dot(c, wc_ref[...], preferred_element_type=jnp.float32)      # (Lc, 1)
    q_lin = jnp.dot(wq_ref[...], qt, preferred_element_type=jnp.float32)     # (1, Lq)
    cq = jnp.dot(c * wcq_ref[...], qt, preferred_element_type=jnp.float32)   # (Lc, Lq)
    s = c_lin + q_lin + cq + b_ref[...]
    a = jax.nn.softmax(s, axis=1)
    c2q = jnp.dot(a, q, preferred_element_type=jnp.float32)                  # (Lc, D)
    s_max = jnp.max(s, axis=1, keepdims=True)                                # (Lc, 1)
    b_w = jax.nn.softmax(s_max, axis=0)                                      # (Lc, 1)
    q2c = jnp.sum(b_w * c, axis=0, keepdims=True)                            # (1, D)
    g_ref[0] = jnp.concatenate([c, c2q, c * c2q, c * q2c], axis=-1)


def att_flow(c, q, params):
    B, Lc, D = c.shape
    Lq = q.shape[1]
    q_t = jnp.transpose(q, (0, 2, 1))                            # (B, D, Lq)
    return pl.pallas_call(
        _att_flow_kernel,
        out_shape=jax.ShapeDtypeStruct((B, Lc, 4 * D), jnp.float32),
        grid=(B,),
        in_specs=[
            pl.BlockSpec((1, Lc, D), lambda b: (b, 0, 0)),
            pl.BlockSpec((1, Lq, D), lambda b: (b, 0, 0)),
            pl.BlockSpec((1, D, Lq), lambda b: (b, 0, 0)),
            pl.BlockSpec((D, 1), lambda b: (0, 0)),
            pl.BlockSpec((1, D), lambda b: (0, 0)),
            pl.BlockSpec((1, D), lambda b: (0, 0)),
            pl.BlockSpec((1, 1), lambda b: (0, 0)),
        ],
        out_specs=pl.BlockSpec((1, Lc, 4 * D), lambda b: (b, 0, 0)),
        compiler_params=pltpu.CompilerParams(dimension_semantics=("parallel",)),
    )(c, q, q_t, params['att_wc'], params['att_wq'], params['att_wcq'], params['att_b'])


# ---------------------------------------------------------------------------
# fused output projections p1 / p2 (single (N, 2) matmul kernel, tiled over N)
# ---------------------------------------------------------------------------
def _output_proj_kernel(g_ref, m_ref, m2_ref, wg_ref, wm1_ref, wm2_ref, b_ref, p_ref):
    p_ref[...] = (jnp.dot(g_ref[...], wg_ref[...], preferred_element_type=jnp.float32)
                  + jnp.dot(m_ref[...], wm1_ref[...], preferred_element_type=jnp.float32)
                  + jnp.dot(m2_ref[...], wm2_ref[...], preferred_element_type=jnp.float32)
                  + b_ref[...])


def output_proj(gf, mf, m2f, op):
    N, d8 = gf.shape
    d2 = mf.shape[1]
    zeros = jnp.zeros((d2, 1), jnp.float32)
    wg = jnp.concatenate([op['wp1g'], op['wp2g']], axis=1)                 # (4*d2, 2)
    wm1 = jnp.concatenate([op['wp1m'], zeros], axis=1)                     # (d2, 2)
    wm2 = jnp.concatenate([zeros, op['wp2m']], axis=1)                     # (d2, 2)
    b = jnp.concatenate([op['bp1g'] + op['bp1m'], op['bp2g'] + op['bp2m']], axis=1)
    nt = _row_tile(N)
    p = pl.pallas_call(
        _output_proj_kernel,
        out_shape=jax.ShapeDtypeStruct((N, 2), jnp.float32),
        grid=(pl.cdiv(N, nt),),
        in_specs=[
            pl.BlockSpec((nt, d8), lambda i: (i, 0)),
            pl.BlockSpec((nt, d2), lambda i: (i, 0)),
            pl.BlockSpec((nt, d2), lambda i: (i, 0)),
            pl.BlockSpec((d8, 2), lambda i: (0, 0)),
            pl.BlockSpec((d2, 2), lambda i: (0, 0)),
            pl.BlockSpec((d2, 2), lambda i: (0, 0)),
            pl.BlockSpec((1, 2), lambda i: (0, 0)),
        ],
        out_specs=pl.BlockSpec((nt, 2), lambda i: (i, 0)),
        compiler_params=pltpu.CompilerParams(dimension_semantics=("parallel",)),
    )(gf, mf, m2f, wg, wm1, wm2, b)
    return p[:, 0], p[:, 1]


# ---------------------------------------------------------------------------
# parameter init (deterministic, synthetic)
# ---------------------------------------------------------------------------
def init_params(key, char_vocab_size, char_dim, char_channel_num, char_channel_width,
                word_vocab_size, word_dim):
    assert (char_channel_num + word_dim) % 2 == 0
    hidden = (char_channel_num + word_dim) // 2
    d2 = 2 * hidden
    ks = iter(jax.random.split(key, 64))

    def nrm(shape, scale=0.2):
        return (scale * jax.random.normal(next(ks), shape)).astype(jnp.float32)

    def lstm_p(din, h):
        # NOTE: single combined bias per direction (= b_ih + b_hh of nn.LSTM).
        return {'wih_f': nrm((din, 4 * h)), 'whh_f': nrm((h, 4 * h)), 'b_f': nrm((1, 4 * h)),
                'wih_b': nrm((din, 4 * h)), 'whh_b': nrm((h, 4 * h)), 'b_b': nrm((1, 4 * h))}

    char_emb = jax.random.uniform(next(ks), (char_vocab_size, char_dim),
                                  minval=-0.001, maxval=0.001).astype(jnp.float32)
    char_emb = char_emb.at[1].set(0.0)                       # padding_idx=1
    word_emb = jax.random.uniform(next(ks), (word_vocab_size, word_dim),
                                  minval=-0.001, maxval=0.001).astype(jnp.float32)
    word_emb = word_emb.at[1].set(0.0)                       # padding_idx=1

    att_b = nrm((1, 1)) + nrm((1, 1)) + nrm((1, 1))          # bc + bq + bcq

    return {
        'char_emb': char_emb,
        'word_emb': word_emb,
        'char_conv_w': nrm((char_dim, char_channel_width, char_channel_num)),
        'char_conv_b': nrm((1, char_channel_num)),
        'highway': {'wl0': nrm((d2, d2)), 'bl0': nrm((1, d2)),
                    'wg0': nrm((d2, d2)), 'bg0': nrm((1, d2)),
                    'wl1': nrm((d2, d2)), 'bl1': nrm((1, d2)),
                    'wg1': nrm((d2, d2)), 'bg1': nrm((1, d2))},
        'context_lstm': lstm_p(d2, hidden),
        'att_wc': nrm((d2, 1)),
        'att_wq': nrm((1, d2)),
        'att_wcq': nrm((1, d2)),
        'att_b': att_b,
        'model_lstm1': lstm_p(4 * d2, hidden),
        'model_lstm2': lstm_p(d2, hidden),
        'output_lstm': lstm_p(d2, hidden),
        'out_proj': {'wp1g': nrm((4 * d2, 1)), 'bp1g': nrm((1, 1)),
                     'wp1m': nrm((d2, 1)),     'bp1m': nrm((1, 1)),
                     'wp2g': nrm((4 * d2, 1)), 'bp2g': nrm((1, 1)),
                     'wp2m': nrm((d2, 1)),     'bp2m': nrm((1, 1))},
    }


# ---------------------------------------------------------------------------
# full forward pass
# ---------------------------------------------------------------------------
def bidaf_forward(params, c_char, q_char, c_word, q_word):
    # TODO(synk): variable-length handling (pack_padded_sequence / softmax
    # masking) is not implemented; sequences are treated as full length.
    # Dropout layers are identity (eval mode / dropout_rate=0).
    c = embed_highway(c_char, c_word, params)                 # (B, Lc, d2)
    q = embed_highway(q_char, q_word, params)                 # (B, Lq, d2)

    c = bilstm(c, params['context_lstm'])
    q = bilstm(q, params['context_lstm'])

    g = att_flow(c, q, params)
    m = bilstm(bilstm(g, params['model_lstm1']), params['model_lstm2'])
    m2 = bilstm(m, params['output_lstm'])

    B, Lc = c_word.shape
    N = B * Lc
    p1, p2 = output_proj(g.reshape(N, -1), m.reshape(N, -1), m2.reshape(N, -1),
                         params['out_proj'])
    return p1.reshape(B, Lc), p2.reshape(B, Lc)


if __name__ == "__main__":
    char_vocab_size, char_dim = 30, 8
    char_channel_num, char_channel_width = 8, 3
    word_vocab_size, word_dim = 50, 8
    dropout_rate = 0.0                       # eval mode; dropout is identity

    B, Lc, Lq, WL = 2, 10, 6, 5

    root = jax.random.PRNGKey(0)
    kp, k1, k2, k3, k4 = jax.random.split(root, 5)
    params = init_params(kp, char_vocab_size, char_dim, char_channel_num,
                         char_channel_width, word_vocab_size, word_dim)

    c_char = jax.random.randint(k1, (B, Lc, WL), 0, char_vocab_size, dtype=jnp.int32)
    q_char = jax.random.randint(k2, (B, Lq, WL), 0, char_vocab_size, dtype=jnp.int32)
    c_word = jax.random.randint(k3, (B, Lc), 0, word_vocab_size, dtype=jnp.int32)
    q_word = jax.random.randint(k4, (B, Lq), 0, word_vocab_size, dtype=jnp.int32)

    p1, p2 = bidaf_forward(params, c_char, q_char, c_word, q_word)
    jax.block_until_ready((p1, p2))
    assert p1.shape == (B, Lc) and p2.shape == (B, Lc)
    assert bool(jnp.all(jnp.isfinite(p1))) and bool(jnp.all(jnp.isfinite(p2)))
    print("KERNEL_OK")
</pallas_src>

<mosaic_0001>
module attributes {stable_mosaic.version = 11 : i64} {
  func.func @_embed_highway_kernel(%arg0: i32, %arg1: memref<3x20x24xf32, #tpu.memory_space<vmem>>, %arg2: memref<24x8xf32, #tpu.memory_space<vmem>>, %arg3: memref<1x8xf32, #tpu.memory_space<vmem>>, %arg4: memref<20x8xf32, #tpu.memory_space<vmem>>, %arg5: memref<16x16xf32, #tpu.memory_space<vmem>>, %arg6: memref<1x16xf32, #tpu.memory_space<vmem>>, %arg7: memref<16x16xf32, #tpu.memory_space<vmem>>, %arg8: memref<1x16xf32, #tpu.memory_space<vmem>>, %arg9: memref<16x16xf32, #tpu.memory_space<vmem>>, %arg10: memref<1x16xf32, #tpu.memory_space<vmem>>, %arg11: memref<16x16xf32, #tpu.memory_space<vmem>>, %arg12: memref<1x16xf32, #tpu.memory_space<vmem>>, %arg13: memref<20x16xf32, #tpu.memory_space<vmem>>) attributes {dimension_semantics = [#tpu.dimension_semantics<parallel>], iteration_bounds = array<i64: 1>, scalar_prefetch = 0 : i64, scratch_operands = 0 : i64, tpu.core_type = #tpu.core_type<tc>, window_params = [{transform_indices = @transform_0, window_bounds = array<i64: 3, 20, 24>}, {pipeline_mode = #tpu.pipeline_mode<synchronous>, transform_indices = @transform_1, window_bounds = array<i64: 24, 8>}, {pipeline_mode = #tpu.pipeline_mode<synchronous>, transform_indices = @transform_2, window_bounds = array<i64: 1, 8>}, {transform_indices = @transform_3, window_bounds = array<i64: 20, 8>}, {pipeline_mode = #tpu.pipeline_mode<synchronous>, transform_indices = @transform_4, window_bounds = array<i64: 16, 16>}, {pipeline_mode = #tpu.pipeline_mode<synchronous>, transform_indices = @transform_5, window_bounds = array<i64: 1, 16>}, {pipeline_mode = #tpu.pipeline_mode<synchronous>, transform_indices = @transform_6, window_bounds = array<i64: 16, 16>}, {pipeline_mode = #tpu.pipeline_mode<synchronous>, transform_indices = @transform_7, window_bounds = array<i64: 1, 16>}, {pipeline_mode = #tpu.pipeline_mode<synchronous>, transform_indices = @transform_8, window_bounds = array<i64: 16, 16>}, {pipeline_mode = #tpu.pipeline_mode<synchronous>, transform_indices = @transform_9, window_bounds = array<i64: 1, 16>}, {pipeline_mode = #tpu.pipeline_mode<synchronous>, transform_indices = @transform_10, window_bounds = array<i64: 16, 16>}, {pipeline_mode = #tpu.pipeline_mode<synchronous>, transform_indices = @transform_11, window_bounds = array<i64: 1, 16>}, {transform_indices = @transform_12, window_bounds = array<i64: 20, 16>}]} {
    %c0 = arith.constant 0 : index
    %c0_0 = arith.constant 0 : index
    %0 = vector.load %arg2[%c0, %c0_0] : memref<24x8xf32, #tpu.memory_space<vmem>>, vector<24x8xf32>
    %c0_1 = arith.constant 0 : index
    %c0_2 = arith.constant 0 : index
    %1 = vector.load %arg3[%c0_1, %c0_2] : memref<1x8xf32, #tpu.memory_space<vmem>>, vector<1x8xf32>
    %c0_3 = arith.constant 0 : index
    %c0_4 = arith.constant 0 : index
    %c0_5 = arith.constant 0 : index
    %2 = vector.load %arg1[%c0_3, %c0_4, %c0_5] : memref<3x20x24xf32, #tpu.memory_space<vmem>>, vector<1x20x24xf32>
    %3 = vector.shape_cast %2 : vector<1x20x24xf32> to vector<20x24xf32>
    %cst = arith.constant dense<0.000000e+00> : vector<20x8xf32>
    %4 = tpu.matmul %3, %0, %cst {dimension_numbers = #tpu.dot_dimension_numbers<[1], [0], [0], [1], [0, 0, 1, 1], [], []>} : vector<20x24xf32>, vector<24x8xf32>, vector<20x8xf32> -> vector<20x8xf32>
    %5 = vector.broadcast %1 : vector<1x8xf32> to vector<20x8xf32>
    %6 = arith.addf %4, %5 : vector<20x8xf32>
    %c1 = arith.constant 1 : index
    %c0_6 = arith.constant 0 : index
    %c0_7 = arith.constant 0 : index
    %7 = vector.load %arg1[%c1, %c0_6, %c0_7] : memref<3x20x24xf32, #tpu.memory_space<vmem>>, vector<1x20x24xf32>
    %8 = vector.shape_cast %7 : vector<1x20x24xf32> to vector<20x24xf32>
    %cst_8 = arith.constant dense<0.000000e+00> : vector<20x8xf32>
    %9 = tpu.matmul %8, %0, %cst_8 {dimension_numbers = #tpu.dot_dimension_numbers<[1], [0], [0], [1], [0, 0, 1, 1], [], []>} : vector<20x24xf32>, vector<24x8xf32>, vector<20x8xf32> -> vector<20x8xf32>
    %10 = vector.broadcast %1 : vector<1x8xf32> to vector<20x8xf32>
    %11 = arith.addf %9, %10 : vector<20x8xf32>
    %12 = arith.maximumf %6, %11 : vector<20x8xf32>
    %c2 = arith.constant 2 : index
    %c0_9 = arith.constant 0 : index
    %c0_10 = arith.constant 0 : index
    %13 = vector.load %arg1[%c2, %c0_9, %c0_10] : memref<3x20x24xf32, #tpu.memory_space<vmem>>, vector<1x20x24xf32>
    %14 = vector.shape_cast %13 : vector<1x20x24xf32> to vector<20x24xf32>
    %cst_11 = arith.constant dense<0.000000e+00> : vector<20x8xf32>
    %15 = tpu.matmul %14, %0, %cst_11 {dimension_numbers = #tpu.dot_dimension_numbers<[1], [0], [0], [1], [0, 0, 1, 1], [], []>} : vector<20x24xf32>, vector<24x8xf32>, vector<20x8xf32> -> vector<20x8xf32>
    %16 = vector.broadcast %1 : vector<1x8xf32> to vector<20x8xf32>
    %17 = arith.addf %15, %16 : vector<20x8xf32>
    %18 = arith.maximumf %12, %17 : vector<20x8xf32>
    %c0_12 = arith.constant 0 : index
    %c0_13 = arith.constant 0 : index
    %19 = vector.load %arg4[%c0_12, %c0_13] : memref<20x8xf32, #tpu.memory_space<vmem>>, vector<20x8xf32>
    %20 = tpu.concatenate %18, %19 in 1 : vector<20x8xf32>, vector<20x8xf32> -> vector<20x16xf32>
    %c0_14 = arith.constant 0 : index
    %c0_15 = arith.constant 0 : index
    %21 = vector.load %arg5[%c0_14, %c0_15] : memref<16x16xf32, #tpu.memory_space<vmem>>, vector<16x16xf32>
    %cst_16 = arith.constant dense<0.000000e+00> : vector<20x16xf32>
    %22 = tpu.matmul %20, %21, %cst_16 {dimension_numbers = #tpu.dot_dimension_numbers<[1], [0], [0], [1], [0, 0, 1, 1], [], []>} : vector<20x16xf32>, vector<16x16xf32>, vector<20x16xf32> -> vector<20x16xf32>
    %c0_17 = arith.constant 0 : index
    %c0_18 = arith.constant 0 : index
    %23 = vector.load %arg6[%c0_17, %c0_18] : memref<1x16xf32, #tpu.memory_space<vmem>>, vector<1x16xf32>
    %24 = vector.broadcast %23 : vector<1x16xf32> to vector<20x16xf32>
    %25 = arith.addf %22, %24 : vector<20x16xf32>
    %cst_19 = arith.constant 0.000000e+00 : f32
    %26 = vector.broadcast %cst_19 : f32 to vector<20x16xf32>
    %27 = arith.maximumf %25, %26 : vector<20x16xf32>
    %c0_20 = arith.constant 0 : index
    %c0_21 = arith.constant 0 : index
    %28 = vector.load %arg7[%c0_20, %c0_21] : memref<16x16xf32, #tpu.memory_space<vmem>>, vector<16x16xf32>
    %cst_22 = arith.constant dense<0.000000e+00> : vector<20x16xf32>
    %29 = tpu.matmul %20, %28, %cst_22 {dimension_numbers = #tpu.dot_dimension_numbers<[1], [0], [0], [1], [0, 0, 1, 1], [], []>} : vector<20x16xf32>, vector<16x16xf32>, vector<20x16xf32> -> vector<20x16xf32>
    %c0_23 = arith.constant 0 : index
    %c0_24 = arith.constant 0 : index
    %30 = vector.load %arg8[%c0_23, %c0_24] : memref<1x16xf32, #tpu.memory_space<vmem>>, vector<1x16xf32>
    %31 = vector.broadcast %30 : vector<1x16xf32> to vector<20x16xf32>
    %32 = arith.addf %29, %31 : vector<20x16xf32>
    %33 = arith.negf %32 : vector<20x16xf32>
    %34 = math.exp %33 : vector<20x16xf32>
    %cst_25 = arith.constant 1.000000e+00 : f32
    %35 = vector.broadcast %cst_25 : f32 to vector<20x16xf32>
    %36 = arith.addf %35, %34 : vector<20x16xf32>
    %37 = arith.divf %35, %36 : vector<20x16xf32>
    %38 = arith.mulf %37, %27 : vector<20x16xf32>
    %cst_26 = arith.constant 1.000000e+00 : f32
    %39 = vector.broadcast %cst_26 : f32 to vector<20x16xf32>
    %40 = arith.subf %39, %37 : vector<20x16xf32>
    %41 = arith.mulf %40, %20 : vector<20x16xf32>
    %42 = arith.addf %38, %41 : vector<20x16xf32>
    %c0_27 = arith.constant 0 : index
    %c0_28 = arith.constant 0 : index
    %43 = vector.load %arg9[%c0_27, %c0_28] : memref<16x16xf32, #tpu.memory_space<vmem>>, vector<16x16xf32>
    %cst_29 = arith.constant dense<0.000000e+00> : vector<20x16xf32>
    %44 = tpu.matmul %42, %43, %cst_29 {dimension_numbers = #tpu.dot_dimension_numbers<[1], [0], [0], [1], [0, 0, 1, 1], [], []>} : vector<20x16xf32>, vector<16x16xf32>, vector<20x16xf32> -> vector<20x16xf32>
    %c0_30 = arith.constant 0 : index
    %c0_31 = arith.constant 0 : index
    %45 = vector.load %arg10[%c0_30, %c0_31] : memref<1x16xf32, #tpu.memory_space<vmem>>, vector<1x16xf32>
    %46 = vector.broadcast %45 : vector<1x16xf32> to vector<20x16xf32>
    %47 = arith.addf %44, %46 : vector<20x16xf32>
    %cst_32 = arith.constant 0.000000e+00 : f32
    %48 = vector.broadcast %cst_32 : f32 to vector<20x16xf32>
    %49 = arith.maximumf %47, %48 : vector<20x16xf32>
    %c0_33 = arith.constant 0 : index
    %c0_34 = arith.constant 0 : index
    %50 = vector.load %arg11[%c0_33, %c0_34] : memref<16x16xf32, #tpu.memory_space<vmem>>, vector<16x16xf32>
    %cst_35 = arith.constant dense<0.000000e+00> : vector<20x16xf32>
    %51 = tpu.matmul %42, %50, %cst_35 {dimension_numbers = #tpu.dot_dimension_numbers<[1], [0], [0], [1], [0, 0, 1, 1], [], []>} : vector<20x16xf32>, vector<16x16xf32>, vector<20x16xf32> -> vector<20x16xf32>
    %c0_36 = arith.constant 0 : index
    %c0_37 = arith.constant 0 : index
    %52 = vector.load %arg12[%c0_36, %c0_37] : memref<1x16xf32, #tpu.memory_space<vmem>>, vector<1x16xf32>
    %53 = vector.broadcast %52 : vector<1x16xf32> to vector<20x16xf32>
    %54 = arith.addf %51, %53 : vector<20x16xf32>
    %55 = arith.negf %54 : vector<20x16xf32>
    %56 = math.exp %55 : vector<20x16xf32>
    %cst_38 = arith.constant 1.000000e+00 : f32
    %57 = vector.broadcast %cst_38 : f32 to vector<20x16xf32>
    %58 = arith.addf %57, %56 : vector<20x16xf32>
    %59 = arith.divf %57, %58 : vector<20x16xf32>
    %60 = arith.mulf %59, %49 : vector<20x16xf32>
    %cst_39 = arith.constant 1.000000e+00 : f32
    %61 = vector.broadcast %cst_39 : f32 to vector<20x16xf32>
    %62 = arith.subf %61, %59 : vector<20x16xf32>
    %63 = arith.mulf %62, %42 : vector<20x16xf32>
    %64 = arith.addf %60, %63 : vector<20x16xf32>
    %c0_40 = arith.constant 0 : index
    %c0_41 = arith.constant 0 : index
    %65 = vector.load %arg13[%c0_40, %c0_41] : memref<20x16xf32, #tpu.memory_space<vmem>>, vector<20x16xf32>
    tpu.vector_store %arg13[%c0_40, %c0_41], %64 {strides = array<i32>} : memref<20x16xf32, #tpu.memory_space<vmem>>, vector<20x16xf32>,
    return
  }
  func.func @transform_0(%arg0: i32) -> (i32, i32, i32) {
    %c0_i32 = arith.constant 0 : i32
    %c0_i32_0 = arith.constant 0 : i32
    %c0_i32_1 = arith.constant 0 : i32
    return %c0_i32, %arg0, %c0_i32_0 : i32, i32, i32
  }
  func.func @transform_1(%arg0: i32) -> (i32, i32) {
    %c0_i32 = arith.constant 0 : i32
    %c0_i32_0 = arith.constant 0 : i32
    %c0_i32_1 = arith.constant 0 : i32
    return %c0_i32, %c0_i32_0 : i32, i32
  }
  func.func @transform_2(%arg0: i32) -> (i32, i32) {
    %c0_i32 = arith.constant 0 : i32
    %c0_i32_0 = arith.constant 0 : i32
    %c0_i32_1 = arith.constant 0 : i32
    return %c0_i32, %c0_i32_0 : i32, i32
  }
  func.func @transform_3(%arg0: i32) -> (i32, i32) {
    %c0_i32 = arith.constant 0 : i32
    %c0_i32_0 = arith.constant 0 : i32
    return %arg0, %c0_i32 : i32, i32
  }
  func.func @transform_4(%arg0: i32) -> (i32, i32) {
    %c0_i32 = arith.constant 0 : i32
    %c0_i32_0 = arith.constant 0 : i32
    %c0_i32_1 = arith.constant 0 : i32
    return %c0_i32, %c0_i32_0 : i32, i32
  }
  func.func @transform_5(%arg0: i32) -> (i32, i32) {
    %c0_i32 = arith.constant 0 : i32
    %c0_i32_0 = arith.constant 0 : i32
    %c0_i32_1 = arith.constant 0 : i32
    return %c0_i32, %c0_i32_0 : i32, i32
  }
  func.func @transform_6(%arg0: i32) -> (i32, i32) {
    %c0_i32 = arith.constant 0 : i32
    %c0_i32_0 = arith.constant 0 : i32
    %c0_i32_1 = arith.constant 0 : i32
    return %c0_i32, %c0_i32_0 : i32, i32
  }
  func.func @transform_7(%arg0: i32) -> (i32, i32) {
    %c0_i32 = arith.constant 0 : i32
    %c0_i32_0 = arith.constant 0 : i32
    %c0_i32_1 = arith.constant 0 : i32
    return %c0_i32, %c0_i32_0 : i32, i32
  }
  func.func @transform_8(%arg0: i32) -> (i32, i32) {
    %c0_i32 = arith.constant 0 : i32
    %c0_i32_0 = arith.constant 0 : i32
    %c0_i32_1 = arith.constant 0 : i32
    return %c0_i32, %c0_i32_0 : i32, i32
  }
  func.func @transform_9(%arg0: i32) -> (i32, i32) {
    %c0_i32 = arith.constant 0 : i32
    %c0_i32_0 = arith.constant 0 : i32
    %c0_i32_1 = arith.constant 0 : i32
    return %c0_i32, %c0_i32_0 : i32, i32
  }
  func.func @transform_10(%arg0: i32) -> (i32, i32) {
    %c0_i32 = arith.constant 0 : i32
    %c0_i32_0 = arith.constant 0 : i32
    %c0_i32_1 = arith.constant 0 : i32
    return %c0_i32, %c0_i32_0 : i32, i32
  }
  func.func @transform_11(%arg0: i32) -> (i32, i32) {
    %c0_i32 = arith.constant 0 : i32
    %c0_i32_0 = arith.constant 0 : i32
    %c0_i32_1 = arith.constant 0 : i32
    return %c0_i32, %c0_i32_0 : i32, i32
  }
  func.func @transform_12(%arg0: i32) -> (i32, i32) {
    %c0_i32 = arith.constant 0 : i32
    %c0_i32_0 = arith.constant 0 : i32
    return %arg0, %c0_i32 : i32, i32
  }
}

</mosaic_0001>

<llo_original>
// kernel: tpu_custom_call.1
$region0: #{tpu_custom_call.1}
  #allocation0 [shape = 'u32[]', space=smem, size = 0x4, offset = 0x4, fixed_abs, tag = 'smem constant byte address 0x4 - core index']
  #allocation1 [shape = 'u32[144,128]{1,0:T(1,128)}', space=vmem, size = 0x12000, scoped, tag = 'internal scratch']
  %s0 = inlined_call_operand.hbm [shape: f32[3,20,24], index: 0, kind: input, shape index: {}]
  %s1 = inlined_call_operand.vmem [shape: f32[24,8], index: 1, kind: input, shape index: {}]
  %s2 = inlined_call_operand.vmem [shape: f32[1,8], index: 2, kind: input, shape index: {}]
  %s3 = inlined_call_operand.vmem [shape: f32[20,8], index: 3, kind: input, shape index: {}]
  %s4 = inlined_call_operand.vmem [shape: f32[16,16], index: 4, kind: input, shape index: {}]
  %s5 = inlined_call_operand.vmem [shape: f32[1,16], index: 5, kind: input, shape index: {}]
  %s6 = inlined_call_operand.vmem [shape: f32[16,16], index: 6, kind: input, shape index: {}]
  %s7 = inlined_call_operand.vmem [shape: f32[1,16], index: 7, kind: input, shape index: {}]
  %s8 = inlined_call_operand.vmem [shape: f32[16,16], index: 8, kind: input, shape index: {}]
  %s9 = inlined_call_operand.vmem [shape: f32[1,16], index: 9, kind: input, shape index: {}]
  %s10 = inlined_call_operand.vmem [shape: f32[16,16], index: 10, kind: input, shape index: {}]
  %s11 = inlined_call_operand.vmem [shape: f32[1,16], index: 11, kind: input, shape index: {}]
  %s12 = inlined_call_operand.vmem [shape: f32[20,16], index: 12, kind: output, shape index: {}]
  %s13 = sld [smem:[#allocation0]]
  $region62: #{tpu_custom_call.1} parent=0
    _
  %s15 = ssub.s32 1, %s13
  %s16 = scalar_select 0, %s15, %s13
  $region1: #{tpu_custom_call.1} parent=0
    #allocation2 [shape = 'u8[36864]{0}', space=vmem, size = 0x9000, scoped, tag = 'input window, operand 0, single buffered']
    #allocation3 [shape = 's32[1]{0}', space=sflag, size = 0x4, scoped, tag = 'scoped memory for tpu_custom_call.1']
    %17 = vsyncpa [#allocation3], 0
    // Predicated region
    $region2: #{tpu_custom_call.1} parent=1 // pred_check
      _
    $region3: #{tpu_custom_call.1} parent=1 // pred_check_branch
      %19 = sbr.rel (0) target = $region5
    $region4: #{tpu_custom_call.1} parent=1 // pred_region
      %s21 = ssub.s32 1152, 1152
      %22 = vsyncadd [#allocation3], %s21
      %s23 = sshll.u32 [#allocation2], 4
      %s24 = int_to_ptr.vmem [resolvable:$true] %s23
      %29 = dma.hbm_to_vmem [thread:$0]  %s0, 1152, %s24, [#allocation3], 128, 128, 8
    $region5: #{tpu_custom_call.1} parent=1 // pred_fallthru
      _
    // Predicated region
    $region6: #{tpu_custom_call.1} parent=1 // pred_check
      _
    $region7: #{tpu_custom_call.1} parent=1 // pred_check_branch
      %31 = sbr.rel (0) target = $region9
    $region8: #{tpu_custom_call.1} parent=1 // pred_region
      _
    $region9: #{tpu_custom_call.1} parent=1 // pred_fallthru
      _
    // Predicated region
    $region10: #{tpu_custom_call.1} parent=1 // pred_check
      _
    $region11: #{tpu_custom_call.1} parent=1 // pred_check_branch
      %33 = sbr.rel (0) target = $region13
    $region12: #{tpu_custom_call.1} parent=1 // pred_region
      _
    $region13: #{tpu_custom_call.1} parent=1 // pred_fallthru
      _
    // Predicated region
    $region14: #{tpu_custom_call.1} parent=1 // pred_check
      _
    $region15: #{tpu_custom_call.1} parent=1 // pred_check_branch
      %35 = sbr.rel (0) target = $region17
    $region16: #{tpu_custom_call.1} parent=1 // pred_region
      _
    $region17: #{tpu_custom_call.1} parent=1 // pred_fallthru
      _
    // Predicated region
    $region18: #{tpu_custom_call.1} parent=1 // pred_check
      _
    $region19: #{tpu_custom_call.1} parent=1 // pred_check_branch
      %37 = sbr.rel (0) target = $region21
    $region20: #{tpu_custom_call.1} parent=1 // pred_region
      _
    $region21: #{tpu_custom_call.1} parent=1 // pred_fallthru
      _
    // Predicated region
    $region22: #{tpu_custom_call.1} parent=1 // pred_check
      _
    $region23: #{tpu_custom_call.1} parent=1 // pred_check_branch
      %39 = sbr.rel (0) target = $region25
    $region24: #{tpu_custom_call.1} parent=1 // pred_region
      _
    $region25: #{tpu_custom_call.1} parent=1 // pred_fallthru
      _
    // Predicated region
    $region26: #{tpu_custom_call.1} parent=1 // pred_check
      _
    $region27: #{tpu_custom_call.1} parent=1 // pred_check_branch
      %41 = sbr.rel (0) target = $region29
    $region28: #{tpu_custom_call.1} parent=1 // pred_region
      _
    $region29: #{tpu_custom_call.1} parent=1 // pred_fallthru
      _
    // Predicated region
    $region30: #{tpu_custom_call.1} parent=1 // pred_check
      _
    $region31: #{tpu_custom_call.1} parent=1 // pred_check_branch
      %43 = sbr.rel (0) target = $region33
    $region32: #{tpu_custom_call.1} parent=1 // pred_region
      _
    $region33: #{tpu_custom_call.1} parent=1 // pred_fallthru
      _
    // Predicated region
    $region34: #{tpu_custom_call.1} parent=1 // pred_check
      _
    $region35: #{tpu_custom_call.1} parent=1 // pred_check_branch
      %45 = sbr.rel (0) target = $region37
    $region36: #{tpu_custom_call.1} parent=1 // pred_region
      _
    $region37: #{tpu_custom_call.1} parent=1 // pred_fallthru
      _
    // Predicated region
    $region38: #{tpu_custom_call.1} parent=1 // pred_check
      _
    $region39: #{tpu_custom_call.1} parent=1 // pred_check_branch
      %47 = sbr.rel (0) target = $region41
    $region40: #{tpu_custom_call.1} parent=1 // pred_region
      _
    $region41: #{tpu_custom_call.1} parent=1 // pred_fallthru
      _
    // Predicated region
    $region42: #{tpu_custom_call.1} parent=1 // pred_check
      _
    $region43: #{tpu_custom_call.1} parent=1 // pred_check_branch
      %49 = sbr.rel (0) target = $region45
    $region44: #{tpu_custom_call.1} parent=1 // pred_region
      _
    $region45: #{tpu_custom_call.1} parent=1 // pred_fallthru
      _
    // Predicated region
    $region46: #{tpu_custom_call.1} parent=1 // pred_check
      _
    $region47: #{tpu_custom_call.1} parent=1 // pred_check_branch
      %51 = sbr.rel (0) target = $region49
    $region48: #{tpu_custom_call.1} parent=1 // pred_region
      _
    $region49: #{tpu_custom_call.1} parent=1 // pred_fallthru
      _
    // Predicated region
    $region50: #{tpu_custom_call.1} parent=1 // pred_check
      _
    $region51: #{tpu_custom_call.1} parent=1 // pred_check_branch
      %53 = sbr.rel (0) target = $region53
    $region52: #{tpu_custom_call.1} parent=1 // pred_region
      %54 = dma.done [#allocation3], 1152
    $region53: #{tpu_custom_call.1} parent=1 // pred_fallthru
      _
    %v55 = vld [vmem:[%s1] sm:$0xff]
    %v56 = vld [vmem:[%s1 + $0x8] sm:$0xff]
    %v57 = vld [vmem:[%s1 + $0x10] sm:$0xff]
    %v58 = vld [vmem:[%s2] sm:$0x1]
    %v59 = vld [vmem:[#allocation2] sm:$0xff]
    %v60 = vld [vmem:[#allocation2 + $0x8] sm:$0xff]
    %v61 = vld [vmem:[#allocation2 + $0x10] sm:$0xf]
    %v63 = vlaneseq
    %v64 = vshrl.u32 %v63, 7
    %v65 = vsub.s32 0, %v64
    %v66 = vrot.slane %v58, %v65
    %vm68 = vcmask 195584
    %v70 = vsel %vm68, %v59, 0
    %v73 = vsel %vm68, %v60, 0
    %v76 = vsel %vm68, %v61, 0
    %78 = vmatprep.subr.mxu0 0.0
    %79 = vmatpush1.msra.mxu0 0.0
    %80 = vmatprep.subr.mxu0 0.0
    %81 = vmatpush1.msra.mxu0 0.0
    %82 = vmatprep.subr.mxu0 0.0
    %83 = vmatpush1.msra.mxu0 0.0
    %84 = vmatprep.subr.mxu0 0.0
    %85 = vmatpush1.msra.mxu0 0.0
    %86 = vmatprep.subr.mxu0 0.0
    %87 = vmatpush1.msra.mxu0 0.0
    %88 = vmatprep.subr.mxu0 0.0
    %89 = vmatpush1.msra.mxu0 0.0
    %90 = vmatprep.subr.mxu0 0.0
    %91 = vmatpush1.msra.mxu0 0.0
    %92 = vmatprep.subr.mxu0 0.0
    %93 = vmatpush1.msra.mxu0 0.0
    %94 = vmatprep.subr.mxu0 0.0
    %95 = vmatpush1.msra.mxu0 0.0
    %96 = vmatprep.subr.mxu0 0.0
    %97 = vmatpush1.msra.mxu0 0.0
    %98 = vmatprep.subr.mxu0 0.0
    %99 = vmatpush1.msra.mxu0 0.0
    %100 = vmatprep.subr.mxu0 0.0
    %101 = vmatpush1.msra.mxu0 0.0
    %102 = vmatprep.subr.mxu0 0.0
    %103 = vmatpush1.msra.mxu0 0.0
    %104 = vmatprep.subr.mxu0 0.0
    %105 = vmatpush1.msra.mxu0 %v57
    %106 = vmatprep.subr.mxu0 0.0
    %107 = vmatpush1.msra.mxu0 %v56
    %108 = vmatprep.subr.mxu0 0.0
    %109 = vmatpush1.msra.mxu0 %v55
    %110 = vmatprep.subr.mxu0 0.0
    %111 = vmatpush2.msra.mxu0 0.0
    %112 = vmatprep.subr.mxu0 0.0
    %113 = vmatpush2.msra.mxu0 0.0
    %114 = vmatprep.subr.mxu0 0.0
    %115 = vmatpush2.msra.mxu0 0.0
    %116 = vmatprep.subr.mxu0 0.0
    %117 = vmatpush2.msra.mxu0 0.0
    %118 = vmatprep.subr.mxu0 0.0
    %119 = vmatpush2.msra.mxu0 0.0
    %120 = vmatprep.subr.mxu0 0.0
    %121 = vmatpush2.msra.mxu0 0.0
    %122 = vmatprep.subr.mxu0 0.0
    %123 = vmatpush2.msra.mxu0 0.0
    %124 = vmatprep.subr.mxu0 0.0
    %125 = vmatpush2.msra.mxu0 0.0
    %126 = vmatprep.subr.mxu0 0.0
    %127 = vmatpush2.msra.mxu0 0.0
    %128 = vmatprep.subr.mxu0 0.0
    %129 = vmatpush2.msra.mxu0 0.0
    %130 = vmatprep.subr.mxu0 0.0
    %131 = vmatpush2.msra.mxu0 0.0
    %132 = vmatprep.subr.mxu0 0.0
    %133 = vmatpush2.msra.mxu0 0.0
    %134 = vmatprep.subr.mxu0 0.0
    %135 = vmatpush2.msra.mxu0 0.0
    %136 = vmatprep.subr.mxu0 0.0
    %137 = vmatpush2.msra.mxu0 0.0
    %138 = vmatprep.subr.mxu0 0.0
    %139 = vmatpush2.msra.mxu0 0.0
    %140 = vmatprep.subr.mxu0 0.0
    %141 = vmatpush2.msra.mxu0 0.0
    %142 = vmatprep.mubr.f32.mxu0 0.0
    %143 = vmatmul.mubr.f32.gmra.mxu0 %v70
    %v144 = vpop.f32.mrf.mxu0
    %v145 = vadd.f32 %v66, %v144
    %v146 = vpop.f32.mrf.mxu0
    %147 = vmatprep.mubr.f32.mxu0 0.0
    %148 = vmatmul.mubr.f32.gmra.mxu0 %v73
    %v149 = vpop.f32.mrf.mxu0
    %v150 = vadd.f32 %v66, %v149
    %v151 = vpop.f32.mrf.mxu0
    %152 = vmatprep.mubr.f32.mxu0 0.0
    %153 = vmatmul.mubr.f32.gmra.mxu0 %v76
    %v154 = vpop.f32.mrf.mxu0
    %v155 = vadd.f32 %v66, %v154
    %v156 = vpop.f32.mrf.mxu0
    %157 = vdwg.mxu0
    %s158 = scalar_lea.vmem [#allocation2], 24
    %v159 = vld [vmem:[%s158] sm:$0xff]
    %v160 = vld [vmem:[%s158 + $0x8] sm:$0xff]
    %v161 = vld [vmem:[%s158 + $0x10] sm:$0xf]
    %v163 = vsel %vm68, %v159, 0
    %v166 = vsel %vm68, %v160, 0
    %v169 = vsel %vm68, %v161, 0
    %171 = vmatprep.subr.mxu0 0.0
    %172 = vmatpush1.msra.mxu0 0.0
    %173 = vmatprep.subr.mxu0 0.0
    %174 = vmatpush1.msra.mxu0 0.0
    %175 = vmatprep.subr.mxu0 0.0
    %176 = vmatpush1.msra.mxu0 0.0
    %177 = vmatprep.subr.mxu0 0.0
    %178 = vmatpush1.msra.mxu0 0.0
    %179 = vmatprep.subr.mxu0 0.0
    %180 = vmatpush1.msra.mxu0 0.0
    %181 = vmatprep.subr.mxu0 0.0
    %182 = vmatpush1.msra.mxu0 0.0
    %183 = vmatprep.subr.mxu0 0.0
    %184 = vmatpush1.msra.mxu0 0.0
    %185 = vmatprep.subr.mxu0 0.0
    %186 = vmatpush1.msra.mxu0 0.0
    %187 = vmatprep.subr.mxu0 0.0
    %188 = vmatpush1.msra.mxu0 0.0
    %189 = vmatprep.subr.mxu0 0.0
    %190 = vmatpush1.msra.mxu0 0.0
    %191 = vmatprep.subr.mxu0 0.0
    %192 = vmatpush1.msra.mxu0 0.0
    %193 = vmatprep.subr.mxu0 0.0
    %194 = vmatpush1.msra.mxu0 0.0
    %195 = vmatprep.subr.mxu0 0.0
    %196 = vmatpush1.msra.mxu0 0.0
    %197 = vmatprep.subr.mxu0 0.0
    %198 = vmatpush1.msra.mxu0 %v57
    %199 = vmatprep.subr.mxu0 0.0
    %200 = vmatpush1.msra.mxu0 %v56
    %201 = vmatprep.subr.mxu0 0.0
    %202 = vmatpush1.msra.mxu0 %v55
    %203 = vmatprep.subr.mxu0 0.0
    %204 = vmatpush2.msra.mxu0 0.0
    %205 = vmatprep.subr.mxu0 0.0
    %206 = vmatpush2.msra.mxu0 0.0
    %207 = vmatprep.subr.mxu0 0.0
    %208 = vmatpush2.msra.mxu0 0.0
    %209 = vmatprep.subr.mxu0 0.0
    %210 = vmatpush2.msra.mxu0 0.0
    %211 = vmatprep.subr.mxu0 0.0
    %212 = vmatpush2.msra.mxu0 0.0
    %213 = vmatprep.subr.mxu0 0.0
    %214 = vmatpush2.msra.mxu0 0.0
    %215 = vmatprep.subr.mxu0 0.0
    %216 = vmatpush2.msra.mxu0 0.0
    %217 = vmatprep.subr.mxu0 0.0
    %218 = vmatpush2.msra.mxu0 0.0
    %219 = vmatprep.subr.mxu0 0.0
    %220 = vmatpush2.msra.mxu0 0.0
    %221 = vmatprep.subr.mxu0 0.0
    %222 = vmatpush2.msra.mxu0 0.0
    %223 = vmatprep.subr.mxu0 0.0
    %224 = vmatpush2.msra.mxu0 0.0
    %225 = vmatprep.subr.mxu0 0.0
    %226 = vmatpush2.msra.mxu0 0.0
    %227 = vmatprep.subr.mxu0 0.0
    %228 = vmatpush2.msra.mxu0 0.0
    %229 = vmatprep.subr.mxu0 0.0
    %230 = vmatpush2.msra.mxu0 0.0
    %231 = vmatprep.subr.mxu0 0.0
    %232 = vmatpush2.msra.mxu0 0.0
    %233 = vmatprep.subr.mxu0 0.0
    %234 = vmatpush2.msra.mxu0 0.0
    %235 = vmatprep.mubr.f32.mxu0 0.0
    %236 = vmatmul.mubr.f32.gmra.mxu0 %v163
    %v237 = vpop.f32.mrf.mxu0
    %v238 = vadd.f32 %v66, %v237
    %v239 = vpop.f32.mrf.mxu0
    %240 = vmatprep.mubr.f32.mxu0 0.0
    %241 = vmatmul.mubr.f32.gmra.mxu0 %v166
    %v242 = vpop.f32.mrf.mxu0
    %v243 = vadd.f32 %v66, %v242
    %v244 = vpop.f32.mrf.mxu0
    %245 = vmatprep.mubr.f32.mxu0 0.0
    %246 = vmatmul.mubr.f32.gmra.mxu0 %v169
    %v247 = vpop.f32.mrf.mxu0
    %v248 = vadd.f32 %v66, %v247
    %v249 = vpop.f32.mrf.mxu0
    %250 = vdwg.mxu0
    %v251 = vmax.f32 %v145, %v238
    %v252 = vmax.f32 %v150, %v243
    %v253 = vmax.f32 %v155, %v248
    %s254 = scalar_lea.vmem [#allocation2], 48
    %v255 = vld [vmem:[%s254] sm:$0xff]
    %v256 = vld [vmem:[%s254 + $0x8] sm:$0xff]
    %v257 = vld [vmem:[%s254 + $0x10] sm:$0xf]
    %v259 = vsel %vm68, %v255, 0
    %v262 = vsel %vm68, %v256, 0
    %v265 = vsel %vm68, %v257, 0
    %267 = vmatprep.subr.mxu0 0.0
    %268 = vmatpush1.msra.mxu0 0.0
    %269 = vmatprep.subr.mxu0 0.0
    %270 = vmatpush1.msra.mxu0 0.0
    %271 = vmatprep.subr.mxu0 0.0
    %272 = vmatpush1.msra.mxu0 0.0
    %273 = vmatprep.subr.mxu0 0.0
    %274 = vmatpush1.msra.mxu0 0.0
    %275 = vmatprep.subr.mxu0 0.0
    %276 = vmatpush1.msra.mxu0 0.0
    %277 = vmatprep.subr.mxu0 0.0
    %278 = vmatpush1.msra.mxu0 0.0
    %279 = vmatprep.subr.mxu0 0.0
    %280 = vmatpush1.msra.mxu0 0.0
    %281 = vmatprep.subr.mxu0 0.0
    %282 = vmatpush1.msra.mxu0 0.0
    %283 = vmatprep.subr.mxu0 0.0
    %284 = vmatpush1.msra.mxu0 0.0
    %285 = vmatprep.subr.mxu0 0.0
    %286 = vmatpush1.msra.mxu0 0.0
    %287 = vmatprep.subr.mxu0 0.0
    %288 = vmatpush1.msra.mxu0 0.0
    %289 = vmatprep.subr.mxu0 0.0
    %290 = vmatpush1.msra.mxu0 0.0
    %291 = vmatprep.subr.mxu0 0.0
    %292 = vmatpush1.msra.mxu0 0.0
    %293 = vmatprep.subr.mxu0 0.0
    %294 = vmatpush1.msra.mxu0 %v57
    %295 = vmatprep.subr.mxu0 0.0
    %296 = vmatpush1.msra.mxu0 %v56
    %297 = vmatprep.subr.mxu0 0.0
    %298 = vmatpush1.msra.mxu0 %v55
    %299 = vmatprep.subr.mxu0 0.0
    %300 = vmatpush2.msra.mxu0 0.0
    %301 = vmatprep.subr.mxu0 0.0
    %302 = vmatpush2.msra.mxu0 0.0
    %303 = vmatprep.subr.mxu0 0.0
    %304 = vmatpush2.msra.mxu0 0.0
    %305 = vmatprep.subr.mxu0 0.0
    %306 = vmatpush2.msra.mxu0 0.0
    %307 = vmatprep.subr.mxu0 0.0
    %308 = vmatpush2.msra.mxu0 0.0
    %309 = vmatprep.subr.mxu0 0.0
    %310 = vmatpush2.msra.mxu0 0.0
    %311 = vmatprep.subr.mxu0 0.0
    %312 = vmatpush2.msra.mxu0 0.0
    %313 = vmatprep.subr.mxu0 0.0
    %314 = vmatpush2.msra.mxu0 0.0
    %315 = vmatprep.subr.mxu0 0.0
    %316 = vmatpush2.msra.mxu0 0.0
    %317 = vmatprep.subr.mxu0 0.0
    %318 = vmatpush2.msra.mxu0 0.0
    %319 = vmatprep.subr.mxu0 0.0
    %320 = vmatpush2.msra.mxu0 0.0
    %321 = vmatprep.subr.mxu0 0.0
    %322 = vmatpush2.msra.mxu0 0.0
    %323 = vmatprep.subr.mxu0 0.0
    %324 = vmatpush2.msra.mxu0 0.0
    %325 = vmatprep.subr.mxu0 0.0
    %326 = vmatpush2.msra.mxu0 0.0
    %327 = vmatprep.subr.mxu0 0.0
    %328 = vmatpush2.msra.mxu0 0.0
    %329 = vmatprep.subr.mxu0 0.0
    %330 = vmatpush2.msra.mxu0 0.0
    %331 = vmatprep.mubr.f32.mxu0 0.0
    %332 = vmatmul.mubr.f32.gmra.mxu0 %v259
    %v333 = vpop.f32.mrf.mxu0
    %v334 = vadd.f32 %v66, %v333
    %v335 = vpop.f32.mrf.mxu0
    %336 = vmatprep.mubr.f32.mxu0 0.0
    %337 = vmatmul.mubr.f32.gmra.mxu0 %v262
    %v338 = vpop.f32.mrf.mxu0
    %v339 = vadd.f32 %v66, %v338
    %v340 = vpop.f32.mrf.mxu0
    %341 = vmatprep.mubr.f32.mxu0 0.0
    %342 = vmatmul.mubr.f32.gmra.mxu0 %v265
    %v343 = vpop.f32.mrf.mxu0
    %v344 = vadd.f32 %v66, %v343
    %v345 = vpop.f32.mrf.mxu0
    %346 = vdwg.mxu0
    %v347 = vmax.f32 %v251, %v334
    %v348 = vmax.f32 %v252, %v339
    %v349 = vmax.f32 %v253, %v344
    %v350 = vld [vmem:[%s3] sm:$0xff]
    %v351 = vld [vmem:[%s3 + $0x8] sm:$0xff]
    %v352 = vld [vmem:[%s3 + $0x10] sm:$0xf]
    %356 = vrot.lane.b32.xlu0 %v350, 8
    %v357 = vpop.permute.xlu0 %356
    %358 = vrot.lane.b32.xlu0 %v351, 8
    %v359 = vpop.permute.xlu0 %358
    %360 = vrot.lane.b32.xlu0 %v352, 8
    %v361 = vpop.permute.xlu0 %360
    %vm365 = vcmask 64512
    %v366 = vsel %vm365, %v347, %v357
    %v367 = vsel %vm365, %v348, %v359
    %v368 = vsel %vm365, %v349, %v361
    %v369 = vld [vmem:[%s4] sm:$0xff]
    %v370 = vld [vmem:[%s4 + $0x8] sm:$0xff]
    %v371 = vld [vmem:[%s5] sm:$0x1]
    %v373 = vlaneseq
    %v374 = vshrl.u32 %v373, 7
    %v375 = vsub.s32 0, %v374
    %v376 = vrot.slane %v371, %v375
    %vm378 = vcmask 130048
    %v380 = vsel %vm378, %v366, 0
    %v383 = vsel %vm378, %v367, 0
    %v386 = vsel %vm378, %v368, 0
    %388 = vmatprep.subr.mxu0 0.0
    %389 = vmatpush1.msra.mxu0 0.0
    %390 = vmatprep.subr.mxu0 0.0
    %391 = vmatpush1.msra.mxu0 0.0
    %392 = vmatprep.subr.mxu0 0.0
    %393 = vmatpush1.msra.mxu0 0.0
    %394 = vmatprep.subr.mxu0 0.0
    %395 = vmatpush1.msra.mxu0 0.0
    %396 = vmatprep.subr.mxu0 0.0
    %397 = vmatpush1.msra.mxu0 0.0
    %398 = vmatprep.subr.mxu0 0.0
    %399 = vmatpush1.msra.mxu0 0.0
    %400 = vmatprep.subr.mxu0 0.0
    %401 = vmatpush1.msra.mxu0 0.0
    %402 = vmatprep.subr.mxu0 0.0
    %403 = vmatpush1.msra.mxu0 0.0
    %404 = vmatprep.subr.mxu0 0.0
    %405 = vmatpush1.msra.mxu0 0.0
    %406 = vmatprep.subr.mxu0 0.0
    %407 = vmatpush1.msra.mxu0 0.0
    %408 = vmatprep.subr.mxu0 0.0
    %409 = vmatpush1.msra.mxu0 0.0
    %410 = vmatprep.subr.mxu0 0.0
    %411 = vmatpush1.msra.mxu0 0.0
    %412 = vmatprep.subr.mxu0 0.0
    %413 = vmatpush1.msra.mxu0 0.0
    %414 = vmatprep.subr.mxu0 0.0
    %415 = vmatpush1.msra.mxu0 0.0
    %416 = vmatprep.subr.mxu0 0.0
    %417 = vmatpush1.msra.mxu0 %v370
    %418 = vmatprep.subr.mxu0 0.0
    %419 = vmatpush1.msra.mxu0 %v369
    %420 = vmatprep.subr.mxu0 0.0
    %421 = vmatpush2.msra.mxu0 0.0
    %422 = vmatprep.subr.mxu0 0.0
    %423 = vmatpush2.msra.mxu0 0.0
    %424 = vmatprep.subr.mxu0 0.0
    %425 = vmatpush2.msra.mxu0 0.0
    %426 = vmatprep.subr.mxu0 0.0
    %427 = vmatpush2.msra.mxu0 0.0
    %428 = vmatprep.subr.mxu0 0.0
    %429 = vmatpush2.msra.mxu0 0.0
    %430 = vmatprep.subr.mxu0 0.0
    %431 = vmatpush2.msra.mxu0 0.0
    %432 = vmatprep.subr.mxu0 0.0
    %433 = vmatpush2.msra.mxu0 0.0
    %434 = vmatprep.subr.mxu0 0.0
    %435 = vmatpush2.msra.mxu0 0.0
    %436 = vmatprep.subr.mxu0 0.0
    %437 = vmatpush2.msra.mxu0 0.0
    %438 = vmatprep.subr.mxu0 0.0
    %439 = vmatpush2.msra.mxu0 0.0
    %440 = vmatprep.subr.mxu0 0.0
    %441 = vmatpush2.msra.mxu0 0.0
    %442 = vmatprep.subr.mxu0 0.0
    %443 = vmatpush2.msra.mxu0 0.0
    %444 = vmatprep.subr.mxu0 0.0
    %445 = vmatpush2.msra.mxu0 0.0
    %446 = vmatprep.subr.mxu0 0.0
    %447 = vmatpush2.msra.mxu0 0.0
    %448 = vmatprep.subr.mxu0 0.0
    %449 = vmatpush2.msra.mxu0 0.0
    %450 = vmatprep.subr.mxu0 0.0
    %451 = vmatpush2.msra.mxu0 0.0
    %452 = vmatprep.mubr.f32.mxu0 0.0
    %453 = vmatmul.mubr.f32.gmra.mxu0 %v380
    %v454 = vpop.f32.mrf.mxu0
    %v455 = vadd.f32 %v376, %v454
    %v456 = vpop.f32.mrf.mxu0
    %457 = vmatprep.mubr.f32.mxu0 0.0
    %458 = vmatmul.mubr.f32.gmra.mxu0 %v383
    %v459 = vpop.f32.mrf.mxu0
    %v460 = vadd.f32 %v376, %v459
    %v461 = vpop.f32.mrf.mxu0
    %462 = vmatprep.mubr.f32.mxu0 0.0
    %463 = vmatmul.mubr.f32.gmra.mxu0 %v386
    %v464 = vpop.f32.mrf.mxu0
    %v465 = vadd.f32 %v376, %v464
    %v466 = vpop.f32.mrf.mxu0
    %467 = vdwg.mxu0
    %v468 = vmax.f32 %v455, 0.0
    %v469 = vmax.f32 %v460, 0.0
    %v470 = vmax.f32 %v465, 0.0
    %v471 = vld [vmem:[%s6] sm:$0xff]
    %v472 = vld [vmem:[%s6 + $0x8] sm:$0xff]
    %v473 = vld [vmem:[%s7] sm:$0x1]
    %v475 = vlaneseq
    %v476 = vshrl.u32 %v475, 7
    %v477 = vsub.s32 0, %v476
    %v478 = vrot.slane %v473, %v477
    %480 = vmatprep.subr.mxu0 0.0
    %481 = vmatpush1.msra.mxu0 0.0
    %482 = vmatprep.subr.mxu0 0.0
    %483 = vmatpush1.msra.mxu0 0.0
    %484 = vmatprep.subr.mxu0 0.0
    %485 = vmatpush1.msra.mxu0 0.0
    %486 = vmatprep.subr.mxu0 0.0
    %487 = vmatpush1.msra.mxu0 0.0
    %488 = vmatprep.subr.mxu0 0.0
    %489 = vmatpush1.msra.mxu0 0.0
    %490 = vmatprep.subr.mxu0 0.0
    %491 = vmatpush1.msra.mxu0 0.0
    %492 = vmatprep.subr.mxu0 0.0
    %493 = vmatpush1.msra.mxu0 0.0
    %494 = vmatprep.subr.mxu0 0.0
    %495 = vmatpush1.msra.mxu0 0.0
    %496 = vmatprep.subr.mxu0 0.0
    %497 = vmatpush1.msra.mxu0 0.0
    %498 = vmatprep.subr.mxu0 0.0
    %499 = vmatpush1.msra.mxu0 0.0
    %500 = vmatprep.subr.mxu0 0.0
    %501 = vmatpush1.msra.mxu0 0.0
    %502 = vmatprep.subr.mxu0 0.0
    %503 = vmatpush1.msra.mxu0 0.0
    %504 = vmatprep.subr.mxu0 0.0
    %505 = vmatpush1.msra.mxu0 0.0
    %506 = vmatprep.subr.mxu0 0.0
    %507 = vmatpush1.msra.mxu0 0.0
    %508 = vmatprep.subr.mxu0 0.0
    %509 = vmatpush1.msra.mxu0 %v472
    %510 = vmatprep.subr.mxu0 0.0
    %511 = vmatpush1.msra.mxu0 %v471
    %512 = vmatprep.subr.mxu0 0.0
    %513 = vmatpush2.msra.mxu0 0.0
    %514 = vmatprep.subr.mxu0 0.0
    %515 = vmatpush2.msra.mxu0 0.0
    %516 = vmatprep.subr.mxu0 0.0
    %517 = vmatpush2.msra.mxu0 0.0
    %518 = vmatprep.subr.mxu0 0.0
    %519 = vmatpush2.msra.mxu0 0.0
    %520 = vmatprep.subr.mxu0 0.0
    %521 = vmatpush2.msra.mxu0 0.0
    %522 = vmatprep.subr.mxu0 0.0
    %523 = vmatpush2.msra.mxu0 0.0
    %524 = vmatprep.subr.mxu0 0.0
    %525 = vmatpush2.msra.mxu0 0.0
    %526 = vmatprep.subr.mxu0 0.0
    %527 = vmatpush2.msra.mxu0 0.0
    %528 = vmatprep.subr.mxu0 0.0
    %529 = vmatpush2.msra.mxu0 0.0
    %530 = vmatprep.subr.mxu0 0.0
    %531 = vmatpush2.msra.mxu0 0.0
    %532 = vmatprep.subr.mxu0 0.0
    %533 = vmatpush2.msra.mxu0 0.0
    %534 = vmatprep.subr.mxu0 0.0
    %535 = vmatpush2.msra.mxu0 0.0
    %536 = vmatprep.subr.mxu0 0.0
    %537 = vmatpush2.msra.mxu0 0.0
    %538 = vmatprep.subr.mxu0 0.0
    %539 = vmatpush2.msra.mxu0 0.0
    %540 = vmatprep.subr.mxu0 0.0
    %541 = vmatpush2.msra.mxu0 0.0
    %542 = vmatprep.subr.mxu0 0.0
    %543 = vmatpush2.msra.mxu0 0.0
    %544 = vmatprep.mubr.f32.mxu0 0.0
    %545 = vmatmul.mubr.f32.gmra.mxu0 %v380
    %v546 = vpop.f32.mrf.mxu0
    %v547 = vadd.f32 %v478, %v546
    %v548 = vpop.f32.mrf.mxu0
    %549 = vmatprep.mubr.f32.mxu0 0.0
    %550 = vmatmul.mubr.f32.gmra.mxu0 %v383
    %v551 = vpop.f32.mrf.mxu0
    %v552 = vadd.f32 %v478, %v551
    %v553 = vpop.f32.mrf.mxu0
    %554 = vmatprep.mubr.f32.mxu0 0.0
    %555 = vmatmul.mubr.f32.gmra.mxu0 %v386
    %v556 = vpop.f32.mrf.mxu0
    %v557 = vadd.f32 %v478, %v556
    %v558 = vpop.f32.mrf.mxu0
    %559 = vdwg.mxu0
    %v560 = vxor.u32 %v547, 2147483648
    %v561 = vxor.u32 %v552, 2147483648
    %v562 = vxor.u32 %v557, 2147483648
    %v563 = vmul.f32 %v560, 1.442695
    %v564 = vpow.pop %v563
    %v565 = vmul.f32 %v561, 1.442695
    %v566 = vpow.pop %v565
    %v567 = vmul.f32 %v562, 1.442695
    %v568 = vpow.pop %v567
    %v569 = vadd.f32 %v564, 1.0
    %v570 = vadd.f32 %v566, 1.0
    %v571 = vadd.f32 %v568, 1.0
    %v572 = vrcp.pop %v569
    %v573 = vmul.f32 1.0, %v572
    %v574 = vrcp.pop %v570
    %v575 = vmul.f32 1.0, %v574
    %v576 = vrcp.pop %v571
    %v577 = vmul.f32 1.0, %v576
    %v578 = vmul.f32 %v573, %v468
    %v579 = vmul.f32 %v575, %v469
    %v580 = vmul.f32 %v577, %v470
    %v581 = vsub.f32 1.0, %v573
    %v582 = vsub.f32 1.0, %v575
    %v583 = vsub.f32 1.0, %v577
    %v584 = vmul.f32 %v581, %v366
    %v585 = vmul.f32 %v582, %v367
    %v586 = vmul.f32 %v583, %v368
    %v587 = vadd.f32 %v578, %v584
    %v588 = vadd.f32 %v579, %v585
    %v589 = vadd.f32 %v580, %v586
    %v590 = vld [vmem:[%s8] sm:$0xff]
    %v591 = vld [vmem:[%s8 + $0x8] sm:$0xff]
    %v592 = vld [vmem:[%s9] sm:$0x1]
    %v594 = vlaneseq
    %v595 = vshrl.u32 %v594, 7
    %v596 = vsub.s32 0, %v595
    %v597 = vrot.slane %v592, %v596
    %v600 = vsel %vm378, %v587, 0
    %v603 = vsel %vm378, %v588, 0
    %v606 = vsel %vm378, %v589, 0
    %608 = vmatprep.subr.mxu0 0.0
    %609 = vmatpush1.msra.mxu0 0.0
    %610 = vmatprep.subr.mxu0 0.0
    %611 = vmatpush1.msra.mxu0 0.0
    %612 = vmatprep.subr.mxu0 0.0
    %613 = vmatpush1.msra.mxu0 0.0
    %614 = vmatprep.subr.mxu0 0.0
    %615 = vmatpush1.msra.mxu0 0.0
    %616 = vmatprep.subr.mxu0 0.0
    %617 = vmatpush1.msra.mxu0 0.0
    %618 = vmatprep.subr.mxu0 0.0
    %619 = vmatpush1.msra.mxu0 0.0
    %620 = vmatprep.subr.mxu0 0.0
    %621 = vmatpush1.msra.mxu0 0.0
    %622 = vmatprep.subr.mxu0 0.0
    %623 = vmatpush1.msra.mxu0 0.0
    %624 = vmatprep.subr.mxu0 0.0
    %625 = vmatpush1.msra.mxu0 0.0
    %626 = vmatprep.subr.mxu0 0.0
    %627 = vmatpush1.msra.mxu0 0.0
    %628 = vmatprep.subr.mxu0 0.0
    %629 = vmatpush1.msra.mxu0 0.0
    %630 = vmatprep.subr.mxu0 0.0
    %631 = vmatpush1.msra.mxu0 0.0
    %632 = vmatprep.subr.mxu0 0.0
    %633 = vmatpush1.msra.mxu0 0.0
    %634 = vmatprep.subr.mxu0 0.0
    %635 = vmatpush1.msra.mxu0 0.0
    %636 = vmatprep.subr.mxu0 0.0
    %637 = vmatpush1.msra.mxu0 %v591
    %638 = vmatprep.subr.mxu0 0.0
    %639 = vmatpush1.msra.mxu0 %v590
    %640 = vmatprep.subr.mxu0 0.0
    %641 = vmatpush2.msra.mxu0 0.0
    %642 = vmatprep.subr.mxu0 0.0
    %643 = vmatpush2.msra.mxu0 0.0
    %644 = vmatprep.subr.mxu0 0.0
    %645 = vmatpush2.msra.mxu0 0.0
    %646 = vmatprep.subr.mxu0 0.0
    %647 = vmatpush2.msra.mxu0 0.0
    %648 = vmatprep.subr.mxu0 0.0
    %649 = vmatpush2.msra.mxu0 0.0
    %650 = vmatprep.subr.mxu0 0.0
    %651 = vmatpush2.msra.mxu0 0.0
    %652 = vmatprep.subr.mxu0 0.0
    %653 = vmatpush2.msra.mxu0 0.0
    %654 = vmatprep.subr.mxu0 0.0
    %655 = vmatpush2.msra.mxu0 0.0
    %656 = vmatprep.subr.mxu0 0.0
    %657 = vmatpush2.msra.mxu0 0.0
    %658 = vmatprep.subr.mxu0 0.0
    %659 = vmatpush2.msra.mxu0 0.0
    %660 = vmatprep.subr.mxu0 0.0
    %661 = vmatpush2.msra.mxu0 0.0
    %662 = vmatprep.subr.mxu0 0.0
    %663 = vmatpush2.msra.mxu0 0.0
    %664 = vmatprep.subr.mxu0 0.0
    %665 = vmatpush2.msra.mxu0 0.0
    %666 = vmatprep.subr.mxu0 0.0
    %667 = vmatpush2.msra.mxu0 0.0
    %668 = vmatprep.subr.mxu0 0.0
    %669 = vmatpush2.msra.mxu0 0.0
    %670 = vmatprep.subr.mxu0 0.0
    %671 = vmatpush2.msra.mxu0 0.0
    %672 = vmatprep.mubr.f32.mxu0 0.0
    %673 = vmatmul.mubr.f32.gmra.mxu0 %v600
    %v674 = vpop.f32.mrf.mxu0
    %v675 = vadd.f32 %v597, %v674
    %v676 = vpop.f32.mrf.mxu0
    %677 = vmatprep.mubr.f32.mxu0 0.0
    %678 = vmatmul.mubr.f32.gmra.mxu0 %v603
    %v679 = vpop.f32.mrf.mxu0
    %v680 = vadd.f32 %v597, %v679
    %v681 = vpop.f32.mrf.mxu0
    %682 = vmatprep.mubr.f32.mxu0 0.0
    %683 = vmatmul.mubr.f32.gmra.mxu0 %v606
    %v684 = vpop.f32.mrf.mxu0
    %v685 = vadd.f32 %v597, %v684
    %v686 = vpop.f32.mrf.mxu0
    %687 = vdwg.mxu0
    %v688 = vmax.f32 %v675, 0.0
    %v689 = vmax.f32 %v680, 0.0
    %v690 = vmax.f32 %v685, 0.0
    %v691 = vld [vmem:[%s10] sm:$0xff]
    %v692 = vld [vmem:[%s10 + $0x8] sm:$0xff]
    %v693 = vld [vmem:[%s11] sm:$0x1]
    %v695 = vlaneseq
    %v696 = vshrl.u32 %v695, 7
    %v697 = vsub.s32 0, %v696
    %v698 = vrot.slane %v693, %v697
    %700 = vmatprep.subr.mxu0 0.0
    %701 = vmatpush1.msra.mxu0 0.0
    %702 = vmatprep.subr.mxu0 0.0
    %703 = vmatpush1.msra.mxu0 0.0
    %704 = vmatprep.subr.mxu0 0.0
    %705 = vmatpush1.msra.mxu0 0.0
    %706 = vmatprep.subr.mxu0 0.0
    %707 = vmatpush1.msra.mxu0 0.0
    %708 = vmatprep.subr.mxu0 0.0
    %709 = vmatpush1.msra.mxu0 0.0
    %710 = vmatprep.subr.mxu0 0.0
    %711 = vmatpush1.msra.mxu0 0.0
    %712 = vmatprep.subr.mxu0 0.0
    %713 = vmatpush1.msra.mxu0 0.0
    %714 = vmatprep.subr.mxu0 0.0
    %715 = vmatpush1.msra.mxu0 0.0
    %716 = vmatprep.subr.mxu0 0.0
    %717 = vmatpush1.msra.mxu0 0.0
    %718 = vmatprep.subr.mxu0 0.0
    %719 = vmatpush1.msra.mxu0 0.0
    %720 = vmatprep.subr.mxu0 0.0
    %721 = vmatpush1.msra.mxu0 0.0
    %722 = vmatprep.subr.mxu0 0.0
    %723 = vmatpush1.msra.mxu0 0.0
    %724 = vmatprep.subr.mxu0 0.0
    %725 = vmatpush1.msra.mxu0 0.0
    %726 = vmatprep.subr.mxu0 0.0
    %727 = vmatpush1.msra.mxu0 0.0
    %728 = vmatprep.subr.mxu0 0.0
    %729 = vmatpush1.msra.mxu0 %v692
    %730 = vmatprep.subr.mxu0 0.0
    %731 = vmatpush1.msra.mxu0 %v691
    %732 = vmatprep.subr.mxu0 0.0
    %733 = vmatpush2.msra.mxu0 0.0
    %734 = vmatprep.subr.mxu0 0.0
    %735 = vmatpush2.msra.mxu0 0.0
    %736 = vmatprep.subr.mxu0 0.0
    %737 = vmatpush2.msra.mxu0 0.0
    %738 = vmatprep.subr.mxu0 0.0
    %739 = vmatpush2.msra.mxu0 0.0
    %740 = vmatprep.subr.mxu0 0.0
    %741 = vmatpush2.msra.mxu0 0.0
    %742 = vmatprep.subr.mxu0 0.0
    %743 = vmatpush2.msra.mxu0 0.0
    %744 = vmatprep.subr.mxu0 0.0
    %745 = vmatpush2.msra.mxu0 0.0
    %746 = vmatprep.subr.mxu0 0.0
    %747 = vmatpush2.msra.mxu0 0.0
    %748 = vmatprep.subr.mxu0 0.0
    %749 = vmatpush2.msra.mxu0 0.0
    %750 = vmatprep.subr.mxu0 0.0
    %751 = vmatpush2.msra.mxu0 0.0
    %752 = vmatprep.subr.mxu0 0.0
    %753 = vmatpush2.msra.mxu0 0.0
    %754 = vmatprep.subr.mxu0 0.0
    %755 = vmatpush2.msra.mxu0 0.0
    %756 = vmatprep.subr.mxu0 0.0
    %757 = vmatpush2.msra.mxu0 0.0
    %758 = vmatprep.subr.mxu0 0.0
    %759 = vmatpush2.msra.mxu0 0.0
    %760 = vmatprep.subr.mxu0 0.0
    %761 = vmatpush2.msra.mxu0 0.0
    %762 = vmatprep.subr.mxu0 0.0
    %763 = vmatpush2.msra.mxu0 0.0
    %764 = vmatprep.mubr.f32.mxu0 0.0
    %765 = vmatmul.mubr.f32.gmra.mxu0 %v600
    %v766 = vpop.f32.mrf.mxu0
    %v767 = vadd.f32 %v698, %v766
    %v768 = vpop.f32.mrf.mxu0
    %769 = vmatprep.mubr.f32.mxu0 0.0
    %770 = vmatmul.mubr.f32.gmra.mxu0 %v603
    %v771 = vpop.f32.mrf.mxu0
    %v772 = vadd.f32 %v698, %v771
    %v773 = vpop.f32.mrf.mxu0
    %774 = vmatprep.mubr.f32.mxu0 0.0
    %775 = vmatmul.mubr.f32.gmra.mxu0 %v606
    %v776 = vpop.f32.mrf.mxu0
    %v777 = vadd.f32 %v698, %v776
    %v778 = vpop.f32.mrf.mxu0
    %779 = vdwg.mxu0
    %v780 = vxor.u32 %v767, 2147483648
    %v781 = vxor.u32 %v772, 2147483648
    %v782 = vxor.u32 %v777, 2147483648
    %v783 = vmul.f32 %v780, 1.442695
    %v784 = vpow.pop %v783
    %v785 = vmul.f32 %v781, 1.442695
    %v786 = vpow.pop %v785
    %v787 = vmul.f32 %v782, 1.442695
    %v788 = vpow.pop %v787
    %v789 = vadd.f32 %v784, 1.0
    %v790 = vadd.f32 %v786, 1.0
    %v791 = vadd.f32 %v788, 1.0
    %v792 = vrcp.pop %v789
    %v793 = vmul.f32 1.0, %v792
    %v794 = vrcp.pop %v790
    %v795 = vmul.f32 1.0, %v794
    %v796 = vrcp.pop %v791
    %v797 = vmul.f32 1.0, %v796
    %v798 = vmul.f32 %v793, %v688
    %v799 = vmul.f32 %v795, %v689
    %v800 = vmul.f32 %v797, %v690
    %v801 = vsub.f32 1.0, %v793
    %v802 = vsub.f32 1.0, %v795
    %v803 = vsub.f32 1.0, %v797
    %v804 = vmul.f32 %v801, %v587
    %v805 = vmul.f32 %v802, %v588
    %v806 = vmul.f32 %v803, %v589
    %v807 = vadd.f32 %v798, %v804
    %v808 = vadd.f32 %v799, %v805
    %v809 = vadd.f32 %v800, %v806
    %810 = vst.msk [vmem:[%s12] sm:$0xff] %vm378, %v807
    %811 = vst.msk [vmem:[%s12 + $0x8] sm:$0xff] %vm378, %v808
    %vm812 = vcmask 125952
    %813 = vst.msk [vmem:[%s12 + $0x10] sm:$0xf] %vm812, %v809
    // Predicated region
    $region54: #{tpu_custom_call.1} parent=1 // pred_check
      _
    $region55: #{tpu_custom_call.1} parent=1 // pred_check_branch
      %815 = sbr.rel (0) target = $region57
    $region56: #{tpu_custom_call.1} parent=1 // pred_region
      _
    $region57: #{tpu_custom_call.1} parent=1 // pred_fallthru
      _
    // Predicated region
    $region58: #{tpu_custom_call.1} parent=1 // pred_check
      _
    $region59: #{tpu_custom_call.1} parent=1 // pred_check_branch
      %817 = sbr.rel (0) target = $region61
    $region60: #{tpu_custom_call.1} parent=1 // pred_region
      _
    $region61: #{tpu_custom_call.1} parent=1 // pred_fallthru
      _
    %818 = vsyncpa [#allocation3], 1

</llo_original>
